<compile_context>
chip_gen: v7x
topology: tpu7x:2x2x1
jax: 0.10.0
libtpu: 0.0.40
codegen_flags: <defaults>
</compile_context>

<pallas_src>
import functools

import numpy as np

import jax
import jax.numpy as jnp
from jax import lax
from jax.experimental import pallas as pl
from jax.experimental.pallas import tpu as pltpu


def _round_up(x, m):
    return ((x + m - 1) // m) * m


def _round_down(x, m):
    return (x // m) * m


def _epilogue(acc, ss, labels, *, scale, num_classes):
    """Final per-row-tile math (all f32, touches only resident tiles).

    acc    : (Nt, Cp) raw dot products  e_raw . p_n^T
    ss     : (Nt, 1)  sum of squares of the raw embedding rows
    labels : (Nt, 1)  int32 class labels
    """
    c_pad = acc.shape[-1]
    # Fused embedding normalization: e_n.p_n = (e.p_n) / max(||e||, eps).
    inv_norm = 1.0 / jnp.maximum(jnp.sqrt(ss), jnp.float32(1e-12))   # (Nt, 1)
    logits = (jnp.float32(2.0 * scale) * inv_norm) * acc             # (Nt, Cp)

    col = lax.broadcasted_iota(jnp.int32, (1, c_pad), 1)
    if num_classes < c_pad:                                          # static
        # -1e30 (not -inf) keeps exp()/select math NaN-free.
        logits = jnp.where(col < num_classes, logits, jnp.float32(-1e30))

    # Own-class logit via one-hot select from the already-resident logits.
    tgt = jnp.sum(jnp.where(col == labels, logits, jnp.float32(0.0)),
                  axis=-1, keepdims=True)                            # (Nt, 1)

    row_max = jnp.max(logits, axis=-1, keepdims=True)
    lse = row_max + jnp.log(jnp.sum(jnp.exp(logits - row_max),
                                    axis=-1, keepdims=True))
    return lse - tgt                                                 # (Nt, 1)


def _proxy_nca_kernel_resident(lab_ref, emb_ref, proxt_ref, out_ref, *,
                               scale, num_classes):
    """Single-K-tile path: proxies^T fully VMEM-resident, no scratch.

    lab_ref   : (Nt, 1)       int32
    emb_ref   : (Nt, D_pad)   bf16  raw (unnormalized) embeddings
    proxt_ref : (D_pad, C_pad) bf16 normalized proxies, pre-transposed
    out_ref   : (Nt, 1)       f32   per-sample loss
    """
    e = emb_ref[...]
    ef = e.astype(jnp.float32)
    ss = jnp.sum(ef * ef, axis=-1, keepdims=True)                    # (Nt, 1)
    acc = jnp.dot(e, proxt_ref[...], preferred_element_type=jnp.float32)
    out_ref[...] = _epilogue(acc, ss, lab_ref[...],
                             scale=scale, num_classes=num_classes)


def _proxy_nca_kernel_streamed(lab_ref, emb_ref, proxt_ref, out_ref,
                               acc_ref, ss_ref, *, scale, num_classes):
    """Fallback path: contraction (D) tiled, proxies streamed per d step."""
    d = pl.program_id(1)

    @pl.when(d == 0)
    def _():
        acc_ref[...] = jnp.zeros_like(acc_ref)
        ss_ref[...] = jnp.zeros_like(ss_ref)

    e = emb_ref[...]
    ef = e.astype(jnp.float32)
    ss_ref[...] += jnp.sum(ef * ef, axis=-1, keepdims=True)
    acc_ref[...] += jnp.dot(e, proxt_ref[...],
                            preferred_element_type=jnp.float32)

    @pl.when(d == pl.num_programs(1) - 1)
    def _():
        out_ref[...] = _epilogue(acc_ref[...], ss_ref[...], lab_ref[...],
                                 scale=scale, num_classes=num_classes)


_PROXY_RESIDENT_BYTES = 24 << 20   # 2 pipeline buffers of proxies^T (bf16)
_VMEM_CAP_BYTES = 60 << 20         # stay under v7x's 64 MiB physical VMEM


@functools.partial(jax.jit, static_argnames=("softmax_scale",))
def proxy_nca_loss(embeddings, labels, proxies, softmax_scale=32.0):
    """Forward of Proxy_NCA.  embeddings (N, D) float, labels (N,) int,
    proxies (C, D) float (the learnable parameter of the torch module)."""
    N, D = embeddings.shape
    C, D2 = proxies.shape
    assert D == D2

    # Proxy normalization (C x D, tiny) stays in XLA / f32; embedding
    # normalization is fused into the kernel.
    p = proxies.astype(jnp.float32)
    p_n = p / jnp.maximum(jnp.sqrt(jnp.sum(p * p, -1, keepdims=True)), 1e-12)

    # ---- padding / tiling ---------------------------------------------------
    C_pad = _round_up(C, 128)          # lane requirement only (not 256)
    D_pad = _round_up(D, 128)

    # Proxies^T resident in VMEM across all row tiles whenever they fit.
    resident = 2 * D_pad * C_pad * 2 <= _PROXY_RESIDENT_BYTES
    if resident:
        D_tile = D_pad
    else:
        # Stream proxies over D tiles; keep the two (D_tile, C_pad) bf16
        # pipeline buffers around 16 MiB.
        D_tile = max(128, min(_round_down(4_000_000 // C_pad, 128), 2048))
        D_pad = _round_up(D, D_tile)

    # Row tile: <= 256 rows, >= 2 row tiles when N allows (v7x megacore), and
    # capped by C_pad so the f32 (N_tile, C_pad) working set stays small.
    n_cap = max(8, min(256, _round_down(1_500_000 // C_pad, 8)))
    if N <= 8:
        N_tile = 8
    else:
        N_tile = min(n_cap, _round_up((N + 1) // 2, 8))
    N_pad = _round_up(N, N_tile)

    emb_p = jnp.pad(embeddings.astype(jnp.bfloat16),
                    ((0, N_pad - N), (0, D_pad - D)))
    proxt_p = jnp.pad(p_n.astype(jnp.bfloat16).T,        # (D, C) pre-transposed
                      ((0, D_pad - D), (0, C_pad - C)))
    lab_p = jnp.pad(labels.astype(jnp.int32).reshape(-1, 1),
                    ((0, N_pad - N), (0, 0)))

    n_row_tiles = N_pad // N_tile
    n_d_tiles = D_pad // D_tile

    # Explicit VMEM budget: double-buffered inputs/outputs + f32 working set.
    est = (2 * N_tile * D_tile * 2              # embeddings (bf16, 2 buffers)
           + 2 * D_tile * C_pad * 2             # proxies^T (bf16, 2 buffers)
           + 2 * N_tile * (4 + 4)               # labels + per-sample output
           + 4 * N_tile * C_pad * 4)            # f32 logits working set
    if n_d_tiles > 1:
        est += N_tile * C_pad * 4 + N_tile * 128 * 4   # scratch accumulators
    vmem_limit = int(min(max(est * 5 // 4 + (2 << 20), 32 << 20),
                         _VMEM_CAP_BYTES))

    if n_d_tiles == 1:
        kernel = functools.partial(_proxy_nca_kernel_resident,
                                   scale=float(softmax_scale), num_classes=C)
        grid_spec = pltpu.PrefetchScalarGridSpec(
            num_scalar_prefetch=0,
            grid=(n_row_tiles,),
            in_specs=[
                pl.BlockSpec((N_tile, 1), lambda i: (i, 0)),       # labels
                pl.BlockSpec((N_tile, D_pad), lambda i: (i, 0)),   # embeddings
                pl.BlockSpec((D_pad, C_pad), lambda i: (0, 0)),    # proxies^T,
                                                                   # VMEM-resident
            ],
            out_specs=pl.BlockSpec((N_tile, 1), lambda i: (i, 0)),
            scratch_shapes=[],
        )
        dim_sem = ("parallel",)
    else:
        kernel = functools.partial(_proxy_nca_kernel_streamed,
                                   scale=float(softmax_scale), num_classes=C)
        grid_spec = pltpu.PrefetchScalarGridSpec(
            num_scalar_prefetch=0,
            grid=(n_row_tiles, n_d_tiles),
            in_specs=[
                pl.BlockSpec((N_tile, 1), lambda i, d: (i, 0)),     # labels
                pl.BlockSpec((N_tile, D_tile), lambda i, d: (i, d)),
                pl.BlockSpec((D_tile, C_pad), lambda i, d: (d, 0)),
            ],
            out_specs=pl.BlockSpec((N_tile, 1), lambda i, d: (i, 0)),
            scratch_shapes=[
                pltpu.VMEM((N_tile, C_pad), jnp.float32),  # e.p^T accumulator
                pltpu.VMEM((N_tile, 1), jnp.float32),      # sum-of-squares acc
            ],
        )
        dim_sem = ("parallel", "arbitrary")

    per_sample = pl.pallas_call(
        kernel,
        out_shape=jax.ShapeDtypeStruct((N_pad, 1), jnp.float32),
        grid_spec=grid_spec,
        compiler_params=pltpu.CompilerParams(
            dimension_semantics=dim_sem,
            vmem_limit_bytes=vmem_limit),
    )(lab_p, emb_p, proxt_p)

    # MeanReducer over the real samples (padded rows discarded).
    return jnp.mean(per_sample[:N, 0])


def _reference_proxy_nca(embeddings, labels, proxies, scale):
    """f64 numpy reference mirroring pytorch-metric-learning ProxyNCALoss."""
    e = np.asarray(embeddings, np.float64)
    p = np.asarray(proxies, np.float64)
    lab = np.asarray(labels)
    e = e / np.maximum(np.linalg.norm(e, axis=-1, keepdims=True), 1e-12)
    p = p / np.maximum(np.linalg.norm(p, axis=-1, keepdims=True), 1e-12)
    d2 = ((e[:, None, :] - p[None, :, :]) ** 2).sum(-1)       # (N, C)
    logits = -scale * d2
    row_max = logits.max(-1, keepdims=True)
    lse = row_max[:, 0] + np.log(np.exp(logits - row_max).sum(-1))
    tgt = logits[np.arange(len(lab)), lab]
    return float((lse - tgt).mean())


if __name__ == "__main__":
    key = jax.random.PRNGKey(0)
    k_e, k_p, k_l = jax.random.split(key, 3)

    nb_classes, sz_embed, batch, scale = 16, 32, 8, 32.0
    embeddings = jax.random.normal(k_e, (batch, sz_embed), dtype=jnp.float32)
    proxies = jax.random.normal(k_p, (nb_classes, sz_embed), dtype=jnp.float32)
    labels = jax.random.randint(k_l, (batch,), 0, nb_classes, dtype=jnp.int32)

    loss = proxy_nca_loss(embeddings, labels, proxies, softmax_scale=scale)
    loss = jax.block_until_ready(loss)

    ref = _reference_proxy_nca(embeddings, labels, proxies, scale)
    # bf16 MXU operands -> validate against the f64 reference with a
    # bf16-sized tolerance.
    assert abs(float(loss) - ref) <= 2e-2 + 2e-2 * abs(ref), (float(loss), ref)
    print("KERNEL_OK")
</pallas_src>

<mosaic_0001>
module attributes {stable_mosaic.version = 11 : i64} {
  func.func @_proxy_nca_kernel_resident(%arg0: i32, %arg1: memref<8x1xi32, #tpu.memory_space<vmem>>, %arg2: memref<8x128xbf16, #tpu.memory_space<vmem>>, %arg3: memref<128x128xbf16, #tpu.memory_space<vmem>>, %arg4: memref<8x1xf32, #tpu.memory_space<vmem>>) attributes {dimension_semantics = [#tpu.dimension_semantics<parallel>], iteration_bounds = array<i64: 1>, scalar_prefetch = 0 : i64, scratch_operands = 0 : i64, tpu.core_type = #tpu.core_type<tc>, window_params = [{transform_indices = @transform_0, window_bounds = array<i64: 8, 1>}, {transform_indices = @transform_1, window_bounds = array<i64: 8, 128>}, {pipeline_mode = #tpu.pipeline_mode<synchronous>, transform_indices = @transform_2, window_bounds = array<i64: 128, 128>}, {transform_indices = @transform_3, window_bounds = array<i64: 8, 1>}]} {
    %c0 = arith.constant 0 : index
    %c0_0 = arith.constant 0 : index
    %0 = vector.load %arg2[%c0, %c0_0] : memref<8x128xbf16, #tpu.memory_space<vmem>>, vector<8x128xbf16>
    %1 = arith.extf %0 : vector<8x128xbf16> to vector<8x128xf32>
    %2 = arith.mulf %1, %1 : vector<8x128xf32>
    %cst = arith.constant dense<0.000000e+00> : vector<8xf32>
    %3 = vector.multi_reduction <add>, %2, %cst [1] : vector<8x128xf32> to vector<8xf32>
    %4 = vector.shape_cast %3 : vector<8xf32> to vector<8x1xf32>
    %c0_1 = arith.constant 0 : index
    %c0_2 = arith.constant 0 : index
    %5 = vector.load %arg3[%c0_1, %c0_2] : memref<128x128xbf16, #tpu.memory_space<vmem>>, vector<128x128xbf16>
    %cst_3 = arith.constant dense<0.000000e+00> : vector<8x128xf32>
    %6 = tpu.matmul %0, %5, %cst_3 {dimension_numbers = #tpu.dot_dimension_numbers<[1], [0], [0], [1], [0, 0, 1, 1], [], []>} : vector<8x128xbf16>, vector<128x128xbf16>, vector<8x128xf32> -> vector<8x128xf32>
    %c0_4 = arith.constant 0 : index
    %c0_5 = arith.constant 0 : index
    %7 = vector.load %arg1[%c0_4, %c0_5] : memref<8x1xi32, #tpu.memory_space<vmem>>, vector<8x1xi32>
    %8 = math.sqrt %4 : vector<8x1xf32>
    %cst_6 = arith.constant 9.99999996E-13 : f32
    %9 = vector.broadcast %cst_6 : f32 to vector<8x1xf32>
    %10 = arith.maximumf %8, %9 : vector<8x1xf32>
    %cst_7 = arith.constant 1.000000e+00 : f32
    %11 = vector.broadcast %cst_7 : f32 to vector<8x1xf32>
    %12 = arith.divf %11, %10 : vector<8x1xf32>
    %cst_8 = arith.constant 6.400000e+01 : f32
    %13 = vector.broadcast %cst_8 : f32 to vector<8x1xf32>
    %14 = arith.mulf %13, %12 : vector<8x1xf32>
    %15 = vector.broadcast %14 : vector<8x1xf32> to vector<8x128xf32>
    %16 = arith.mulf %15, %6 : vector<8x128xf32>
    %17 = tpu.iota {dimensions = array<i32: 1>} : vector<1x128xi32>
    %c16_i32 = arith.constant 16 : i32
    %18 = vector.broadcast %c16_i32 : i32 to vector<1x128xi32>
    %19 = arith.cmpi slt, %17, %18 : vector<1x128xi32>
    %cst_9 = arith.constant -1.000000e+30 : f32
    %20 = vector.shape_cast %19 : vector<1x128xi1> to vector<1x128xi1>
    %21 = vector.broadcast %20 : vector<1x128xi1> to vector<8x128xi1>
    %22 = vector.broadcast %cst_9 : f32 to vector<8x128xf32>
    %23 = arith.select %21, %16, %22 : vector<8x128xi1>, vector<8x128xf32>
    %24 = vector.broadcast %17 : vector<1x128xi32> to vector<8x128xi32>
    %25 = vector.broadcast %7 : vector<8x1xi32> to vector<8x128xi32>
    %26 = arith.cmpi eq, %24, %25 : vector<8x128xi32>
    %cst_10 = arith.constant 0.000000e+00 : f32
    %27 = vector.broadcast %cst_10 : f32 to vector<8x128xf32>
    %28 = arith.select %26, %23, %27 : vector<8x128xi1>, vector<8x128xf32>
    %cst_11 = arith.constant dense<0.000000e+00> : vector<8xf32>
    %29 = vector.multi_reduction <add>, %28, %cst_11 [1] : vector<8x128xf32> to vector<8xf32>
    %30 = vector.shape_cast %29 : vector<8xf32> to vector<8x1xf32>
    %cst_12 = arith.constant dense<0xFF800000> : vector<8xf32>
    %31 = vector.multi_reduction <maximumf>, %23, %cst_12 [1] : vector<8x128xf32> to vector<8xf32>
    %32 = vector.shape_cast %31 : vector<8xf32> to vector<8x1xf32>
    %33 = vector.broadcast %32 : vector<8x1xf32> to vector<8x128xf32>
    %34 = arith.subf %23, %33 : vector<8x128xf32>
    %35 = math.exp %34 : vector<8x128xf32>
    %cst_13 = arith.constant dense<0.000000e+00> : vector<8xf32>
    %36 = vector.multi_reduction <add>, %35, %cst_13 [1] : vector<8x128xf32> to vector<8xf32>
    %37 = vector.shape_cast %36 : vector<8xf32> to vector<8x1xf32>
    %38 = math.log %37 : vector<8x1xf32>
    %39 = arith.addf %32, %38 : vector<8x1xf32>
    %40 = arith.subf %39, %30 : vector<8x1xf32>
    %c0_14 = arith.constant 0 : index
    %c0_15 = arith.constant 0 : index
    %41 = vector.load %arg4[%c0_14, %c0_15] : memref<8x1xf32, #tpu.memory_space<vmem>>, vector<8x1xf32>
    tpu.vector_store %arg4[%c0_14, %c0_15], %40 {strides = array<i32>} : memref<8x1xf32, #tpu.memory_space<vmem>>, vector<8x1xf32>,
    return
  }
  func.func @transform_0(%arg0: i32) -> (i32, i32) {
    %c0_i32 = arith.constant 0 : i32
    %c0_i32_0 = arith.constant 0 : i32
    return %arg0, %c0_i32 : i32, i32
  }
  func.func @transform_1(%arg0: i32) -> (i32, i32) {
    %c0_i32 = arith.constant 0 : i32
    %c0_i32_0 = arith.constant 0 : i32
    return %arg0, %c0_i32 : i32, i32
  }
  func.func @transform_2(%arg0: i32) -> (i32, i32) {
    %c0_i32 = arith.constant 0 : i32
    %c0_i32_0 = arith.constant 0 : i32
    %c0_i32_1 = arith.constant 0 : i32
    return %c0_i32, %c0_i32_0 : i32, i32
  }
  func.func @transform_3(%arg0: i32) -> (i32, i32) {
    %c0_i32 = arith.constant 0 : i32
    %c0_i32_0 = arith.constant 0 : i32
    return %arg0, %c0_i32 : i32, i32
  }
}

</mosaic_0001>

<llo_original>
// kernel: proxy_nca_loss.1
$region0: #{proxy_nca_loss.1}
  #allocation0 [shape = 'u32[]', space=smem, size = 0x4, offset = 0x4, fixed_abs, tag = 'smem constant byte address 0x4 - core index']
  #allocation1 [shape = 'u32[144,128]{1,0:T(1,128)}', space=vmem, size = 0x12000, scoped, tag = 'internal scratch']
  %s0 = inlined_call_operand.vmem [shape: s32[8,1], index: 0, kind: input, shape index: {}]
  %s1 = inlined_call_operand.vmem [shape: bf16[8,128], index: 1, kind: input, shape index: {}]
  %s2 = inlined_call_operand.vmem [shape: bf16[128,128], index: 2, kind: input, shape index: {}]
  %s3 = inlined_call_operand.vmem [shape: f32[8,1], index: 3, kind: output, shape index: {}]
  %s4 = sld [smem:[#allocation0]]
  $region22: #{proxy_nca_loss.1} parent=0
    _
  %s6 = ssub.s32 1, %s4
  %s7 = scalar_select 0, %s6, %s4
  // Predicated region
  $region2: #{proxy_nca_loss.1} parent=0 // pred_check
    _
  $region3: #{proxy_nca_loss.1} parent=0 // pred_check_branch
    %9 = sbr.rel (0) target = $region5
  $region4: #{proxy_nca_loss.1} parent=0 // pred_region
    _
  $region5: #{proxy_nca_loss.1} parent=0 // pred_fallthru
    _
  // Predicated region
  $region6: #{proxy_nca_loss.1} parent=0 // pred_check
    _
  $region7: #{proxy_nca_loss.1} parent=0 // pred_check_branch
    %11 = sbr.rel (0) target = $region9
  $region8: #{proxy_nca_loss.1} parent=0 // pred_region
    _
  $region9: #{proxy_nca_loss.1} parent=0 // pred_fallthru
    _
  // Predicated region
  $region10: #{proxy_nca_loss.1} parent=0 // pred_check
    _
  $region11: #{proxy_nca_loss.1} parent=0 // pred_check_branch
    %13 = sbr.rel (0) target = $region13
  $region12: #{proxy_nca_loss.1} parent=0 // pred_region
    _
  $region13: #{proxy_nca_loss.1} parent=0 // pred_fallthru
    _
  %v15 = vld [vmem:[%s1] sm:$0xf]
  %v16 = vunpack.c.l.bf16 %v15
  %v17 = vmul.f32 %v16, %v16
  %18 = vadd.xlane.f32.xlu0 %v17
  %v19 = vpop.xlane.xlu0 %18
  %v20 = vld [vmem:[%s2] sm:$0xf]
  %v21 = vld [vmem:[%s2 + $0x4] sm:$0xf]
  %v22 = vld [vmem:[%s2 + $0x8] sm:$0xf]
  %v23 = vld [vmem:[%s2 + $0xc] sm:$0xf]
  %v24 = vld [vmem:[%s2 + $0x10] sm:$0xf]
  %v25 = vld [vmem:[%s2 + $0x14] sm:$0xf]
  %v26 = vld [vmem:[%s2 + $0x18] sm:$0xf]
  %v27 = vld [vmem:[%s2 + $0x1c] sm:$0xf]
  %v28 = vld [vmem:[%s2 + $0x20] sm:$0xf]
  %v29 = vld [vmem:[%s2 + $0x24] sm:$0xf]
  %v30 = vld [vmem:[%s2 + $0x28] sm:$0xf]
  %v31 = vld [vmem:[%s2 + $0x2c] sm:$0xf]
  %v32 = vld [vmem:[%s2 + $0x30] sm:$0xf]
  %v33 = vld [vmem:[%s2 + $0x34] sm:$0xf]
  %v34 = vld [vmem:[%s2 + $0x38] sm:$0xf]
  %v35 = vld [vmem:[%s2 + $0x3c] sm:$0xf]
  %v52 = vunpack.c.l.b16 %v20
  %v53 = vunpack.c.l.b16 %v21
  %v54 = vunpack.c.l.b16 %v22
  %v55 = vunpack.c.l.b16 %v23
  %v56 = vunpack.c.l.b16 %v24
  %v57 = vunpack.c.l.b16 %v25
  %v58 = vunpack.c.l.b16 %v26
  %v59 = vunpack.c.l.b16 %v27
  %v60 = vunpack.c.l.b16 %v28
  %v61 = vunpack.c.l.b16 %v29
  %v62 = vunpack.c.l.b16 %v30
  %v63 = vunpack.c.l.b16 %v31
  %v64 = vunpack.c.l.b16 %v32
  %v65 = vunpack.c.l.b16 %v33
  %v66 = vunpack.c.l.b16 %v34
  %v67 = vunpack.c.l.b16 %v35
  %v68 = vpack.c.b16 %v53, %v52
  %v69 = vpack.c.b16 %v55, %v54
  %v70 = vpack.c.b16 %v57, %v56
  %v71 = vpack.c.b16 %v59, %v58
  %v72 = vpack.c.b16 %v61, %v60
  %v73 = vpack.c.b16 %v63, %v62
  %v74 = vpack.c.b16 %v65, %v64
  %v75 = vpack.c.b16 %v67, %v66
  %84 = vmatprep.subr.bf16.mxu0 0
  %85 = vmatpush1.bf16.msra.mxu0 %v68
  %86 = vmatprep.subr.bf16.mxu0 0
  %87 = vmatpush1.bf16.msra.mxu0 %v69
  %88 = vmatprep.subr.bf16.mxu0 0
  %89 = vmatpush1.bf16.msra.mxu0 %v70
  %90 = vmatprep.subr.bf16.mxu0 0
  %91 = vmatpush1.bf16.msra.mxu0 %v71
  %92 = vmatprep.subr.bf16.mxu0 0
  %93 = vmatpush1.bf16.msra.mxu0 %v72
  %94 = vmatprep.subr.bf16.mxu0 0
  %95 = vmatpush1.bf16.msra.mxu0 %v73
  %96 = vmatprep.subr.bf16.mxu0 0
  %97 = vmatpush1.bf16.msra.mxu0 %v74
  %98 = vmatprep.subr.bf16.mxu0 0
  %99 = vmatpush1.bf16.msra.mxu0 %v75
  %100 = vmatprep.subr.bf16.mxu0 0
  %101 = vmatpush1.bf16.msra.mxu0 0
  %102 = vmatprep.subr.bf16.mxu0 0
  %103 = vmatpush1.bf16.msra.mxu0 0
  %104 = vmatprep.subr.bf16.mxu0 0
  %105 = vmatpush1.bf16.msra.mxu0 0
  %106 = vmatprep.subr.bf16.mxu0 0
  %107 = vmatpush1.bf16.msra.mxu0 0
  %108 = vmatprep.subr.bf16.mxu0 0
  %109 = vmatpush1.bf16.msra.mxu0 0
  %110 = vmatprep.subr.bf16.mxu0 0
  %111 = vmatpush1.bf16.msra.mxu0 0
  %112 = vmatprep.subr.bf16.mxu0 0
  %113 = vmatpush1.bf16.msra.mxu0 0
  %114 = vmatprep.subr.bf16.mxu0 0
  %115 = vmatpush1.bf16.msra.mxu0 0
  %116 = vmatprep.mubr.bf16.mxu0 0
  %117 = vmatmul.mubr.bf16.gmra.mrb[0].mxu0 %v15
  %v118 = vpop.f32.mrb[0].mxu0
  %v119 = vadd.f32 0.0, %v118
  %v120 = vpop.f32.mrb[0].mxu0
  %v121 = vpop.f32.mrb[0].mxu0
  %v122 = vpop.f32.mrb[0].mxu0
  %123 = vdwg.mxu0
  %v124 = vld [vmem:[%s0] sm:$0xff]
  %v125 = vrsqrt.pop %v19
  %v126 = vmul.f32 %v19, %v125
  %vm127 = vcmp.eq.f32.partialorder %v19, inf
  %v128 = vsel %vm127, %v19, %v126
  %vm129 = vcmp.eq.f32.partialorder %v19, 0.0
  %v130 = vand.u32 %v19, 2147483648
  %v131 = vsel %vm129, %v130, %v128
  %v132 = vmax.f32 %v131, 1e-12
  %v133 = vrcp.pop %v132
  %v134 = vmul.f32 1.0, %v133
  %v135 = vmul.f32 %v134, 64.0
  %v136 = vmul.f32 %v135, %v119
  %v137 = vlaneseq
  %v138 = vand.u32 %v137, 127
  %vm139 = vcmp.lt.s32.totalorder %v138, 16
  %v140 = vsel %vm139, 1, 0
  %vm141 = vcmp.eq.s32.totalorder %v140, 1
  %v142 = vsel %vm141, %v136, -1e+30
  %143 = vset.pattern.permute.xlu0 0
  %144 = vperm.xlu0 %143, %v124
  %v145 = vpop.permute.xlu0 %144
  %vm146 = vcmp.eq.s32.totalorder %v138, %v145
  %v147 = vsel %vm146, %v142, 0.0
  %148 = vadd.xlane.f32.xlu0 %v147
  %v149 = vpop.xlane.xlu0 %148
  %150 = vmax.xlane.f32.xlu0 %v142
  %v151 = vpop.xlane.xlu0 %150
  %v152 = vsub.f32 %v142, %v151
  %v153 = vmul.f32 %v152, 1.442695
  %v154 = vpow.pop %v153
  %155 = vadd.xlane.f32.xlu0 %v154
  %v156 = vpop.xlane.xlu0 %155
  %v157 = vlog2.pop %v156
  %v158 = vmul.f32 %v157, 0.6931472
  %v159 = vadd.f32 %v151, %v158
  %v160 = vsub.f32 %v159, %v149
  %vm161 = vcmask 7168
  %162 = vst.msk [vmem:[%s3] sm:$0xff] %vm161, %v160
  // Predicated region
  $region14: #{proxy_nca_loss.1} parent=0 // pred_check
    _
  $region15: #{proxy_nca_loss.1} parent=0 // pred_check_branch
    %164 = sbr.rel (0) target = $region17
  $region16: #{proxy_nca_loss.1} parent=0 // pred_region
    _
  $region17: #{proxy_nca_loss.1} parent=0 // pred_fallthru
    _
  // Predicated region
  $region18: #{proxy_nca_loss.1} parent=0 // pred_check
    _
  $region19: #{proxy_nca_loss.1} parent=0 // pred_check_branch
    %166 = sbr.rel (0) target = $region21
  $region20: #{proxy_nca_loss.1} parent=0 // pred_region
    _
  $region21: #{proxy_nca_loss.1} parent=0 // pred_fallthru
    _

</llo_original>
